<compile_context>
chip_gen: v7x
topology: tpu7x:2x2x1
jax: 0.10.0
libtpu: 0.0.40
codegen_flags: <defaults>
</compile_context>

<pallas_src>
import functools

import jax
import jax.numpy as jnp
from jax.experimental import pallas as pl
from jax.experimental.pallas import tpu as pltpu


def transition_down_kernel(x_ref, w_ref, b_ref, o_ref):
    """Fused (BN -> 1x1 conv -> avgpool2x2) on one (batch, Ho-tile) block.

    x_ref: (1, THo, 2, Wo, 2*C)  input stripe; dim 2 is the H-parity of the
                                 2x2 window, lane halves are the W-parity.
    w_ref: (C, C)   fused weight  = 0.25 * scale[:,None] * conv_w[:, :, 0, 0].T
    b_ref: (1, C)   fused bias    = shift @ conv_w[:,:,0,0].T + conv_b   (f32)
    o_ref: (1, THo, Wo, C)
    """
    tho = o_ref.shape[1]
    wo = o_ref.shape[2]
    c = o_ref.shape[3]

    # 2x2 window sum.  H-direction: pair of non-minor-dim slabs (cheap VPU add).
    xh = x_ref[0, :, 0] + x_ref[0, :, 1]              # (THo, Wo, 2*C)
    # W-direction: the two window columns live in the two lane-halves.
    xw = xh[..., :c] + xh[..., c:]                    # (THo, Wo, C)

    # Single matmul: (THo*Wo, C) @ (C, C).  Scale and the 1/4 pooling factor
    # are folded into w_ref; BN shift and conv bias are folded into b_ref.
    xs = xw.reshape(tho * wo, c).astype(w_ref.dtype)
    y = jnp.dot(xs, w_ref[...], preferred_element_type=jnp.float32)
    y = y + b_ref[0].astype(jnp.float32)

    # TODO(synk): Dropout2d is identity in eval mode; training-mode channel
    #             dropout (and training-mode BN batch stats) are not modeled.
    o_ref[0] = y.reshape(tho, wo, c).astype(o_ref.dtype)


def _pick_h_tile(ho, wo, c, in_itemsize, out_itemsize,
                 target_rows=1024, max_bytes=4 * 1024 * 1024):
    """Largest divisor of Ho whose block fits a small VMEM budget.

    Keeps pooled matmul rows (THo*Wo) around ~1K and the per-step block a few
    MiB, so double-buffering stays well inside v7x's 64 MiB VMEM while giving
    the pipeline many grid steps on large images.
    """
    best = 1
    for t in range(1, ho + 1):
        if ho % t:
            continue
        in_bytes = t * 2 * wo * 2 * c * in_itemsize
        out_bytes = t * wo * c * out_itemsize
        if in_bytes + out_bytes <= max_bytes and (t * wo <= target_rows or t == 1):
            best = t
    return best


@functools.partial(jax.jit, static_argnames=("eps", "mxu_dtype"))
def transition_down(x_nchw, gamma, beta, running_mean, running_var,
                    conv_w, conv_b, eps=1e-5, mxu_dtype=jnp.bfloat16):
    N, C, H, W = x_nchw.shape
    Ho, Wo = H // 2, W // 2

    # Single layout transpose (channels-last so C maps to TPU lanes); the
    # subsequent reshape is free (no data movement).
    x_nhwc = jnp.transpose(x_nchw, (0, 2, 3, 1))          # (N, H, W, C)
    x_r = x_nhwc.reshape(N, Ho, 2, Wo, 2 * C)             # free reshape

    # Fold BN (eval running stats) + 1/4 pool factor into the conv weight,
    # and BN shift (through the conv) + conv bias into one fused bias.
    scale = (gamma / jnp.sqrt(running_var + eps)).astype(jnp.float32)   # (Cin,)
    shift = (beta.astype(jnp.float32)
             - running_mean.astype(jnp.float32) * scale)                # (Cin,)
    w2d = conv_w[:, :, 0, 0].astype(jnp.float32)                        # (Cout, Cin)
    w_fused = ((0.25 * scale)[:, None] * w2d.T).astype(mxu_dtype)       # (Cin, Cout)
    b_fused = (shift @ w2d.T + conv_b.astype(jnp.float32)).reshape(1, C)

    tho = _pick_h_tile(Ho, Wo, C, x_r.dtype.itemsize,
                       jnp.dtype(x_nchw.dtype).itemsize)
    grid = (N, Ho // tho)

    out = pl.pallas_call(
        transition_down_kernel,
        out_shape=jax.ShapeDtypeStruct((N, Ho, Wo, C), x_nchw.dtype),
        grid_spec=pltpu.PrefetchScalarGridSpec(
            num_scalar_prefetch=0,
            grid=grid,
            in_specs=[
                pl.BlockSpec((1, tho, 2, Wo, 2 * C), lambda n, t: (n, t, 0, 0, 0)),
                pl.BlockSpec((C, C), lambda n, t: (0, 0)),   # resident weight
                pl.BlockSpec((1, C), lambda n, t: (0, 0)),   # resident fused bias
            ],
            out_specs=pl.BlockSpec((1, tho, Wo, C), lambda n, t: (n, t, 0, 0)),
        ),
        compiler_params=pltpu.CompilerParams(
            dimension_semantics=("parallel", "parallel"),
            vmem_limit_bytes=48 * 1024 * 1024,   # explicit; blocks are a few MiB
        ),
    )(x_r, w_fused, b_fused)

    # back to NCHW
    return out.transpose(0, 3, 1, 2)


def transition_down_ref(x, gamma, beta, running_mean, running_var,
                        conv_w, conv_b, eps=1e-5):
    """Pure-JAX reference (eval-mode PyTorch semantics), NCHW."""
    N, C, H, W = x.shape
    scale = gamma / jnp.sqrt(running_var + eps)
    shift = beta - running_mean * scale
    x_bn = x * scale[None, :, None, None] + shift[None, :, None, None]
    w2d = conv_w[:, :, 0, 0]                                            # (Cout, Cin)
    y = jnp.einsum('nchw,oc->nohw', x_bn, w2d) + conv_b[None, :, None, None]
    y = y.reshape(N, C, H // 2, 2, W // 2, 2).mean(axis=(3, 5))         # AvgPool2d(2)
    return y


if __name__ == "__main__":
    key = jax.random.PRNGKey(0)
    kx, kg, kb, km, kv, kw, kc = jax.random.split(key, 7)

    N, C, H, W = 2, 4, 16, 16
    x = jax.random.normal(kx, (N, C, H, W), dtype=jnp.float32)

    # Deterministic synthetic parameters (BatchNorm2d + Conv2d(1x1)).
    gamma = 1.0 + 0.1 * jax.random.normal(kg, (C,), dtype=jnp.float32)
    beta = 0.1 * jax.random.normal(kb, (C,), dtype=jnp.float32)
    running_mean = 0.1 * jax.random.normal(km, (C,), dtype=jnp.float32)
    running_var = jax.random.uniform(kv, (C,), dtype=jnp.float32,
                                     minval=0.5, maxval=1.5)
    conv_w = jax.random.normal(kw, (C, C, 1, 1), dtype=jnp.float32) * 0.2
    conv_b = 0.1 * jax.random.normal(kc, (C,), dtype=jnp.float32)

    ref = transition_down_ref(x, gamma, beta, running_mean, running_var,
                              conv_w, conv_b)

    # f32 MXU path: exact (up to fold re-association), tight tolerance.
    out_f32 = transition_down(x, gamma, beta, running_mean, running_var,
                              conv_w, conv_b, mxu_dtype=jnp.float32)
    out_f32 = jax.block_until_ready(out_f32)
    assert out_f32.shape == (N, C, H // 2, W // 2), out_f32.shape
    assert jnp.allclose(out_f32, ref, atol=1e-4, rtol=1e-4), \
        float(jnp.max(jnp.abs(out_f32 - ref)))

    # Default bf16 MXU path (v6e/v7x-friendly): looser tolerance.
    out_bf16 = transition_down(x, gamma, beta, running_mean, running_var,
                               conv_w, conv_b)
    out_bf16 = jax.block_until_ready(out_bf16)
    assert out_bf16.shape == (N, C, H // 2, W // 2), out_bf16.shape
    assert jnp.allclose(out_bf16, ref, atol=2e-2, rtol=2e-2), \
        float(jnp.max(jnp.abs(out_bf16 - ref)))

    print("KERNEL_OK")
</pallas_src>

<mosaic_0001>
module attributes {stable_mosaic.version = 11 : i64} {
  func.func @transition_down_kernel(%arg0: i32, %arg1: i32, %arg2: memref<1x8x2x8x8xf32, #tpu.memory_space<vmem>>, %arg3: memref<4x4xf32, #tpu.memory_space<vmem>>, %arg4: memref<1x4xf32, #tpu.memory_space<vmem>>, %arg5: memref<1x8x8x4xf32, #tpu.memory_space<vmem>>) attributes {dimension_semantics = [#tpu.dimension_semantics<parallel>, #tpu.dimension_semantics<parallel>], iteration_bounds = array<i64: 2, 1>, scalar_prefetch = 0 : i64, scratch_operands = 0 : i64, tpu.core_type = #tpu.core_type<tc>, window_params = [{transform_indices = @transform_0, window_bounds = array<i64: 1, 8, 2, 8, 8>}, {pipeline_mode = #tpu.pipeline_mode<synchronous>, transform_indices = @transform_1, window_bounds = array<i64: 4, 4>}, {pipeline_mode = #tpu.pipeline_mode<synchronous>, transform_indices = @transform_2, window_bounds = array<i64: 1, 4>}, {transform_indices = @transform_3, window_bounds = array<i64: 1, 8, 8, 4>}]} {
    %c0 = arith.constant 0 : index
    %c0_0 = arith.constant 0 : index
    %c0_1 = arith.constant 0 : index
    %c0_2 = arith.constant 0 : index
    %c0_3 = arith.constant 0 : index
    %0 = vector.load %arg2[%c0, %c0_0, %c0_1, %c0_2, %c0_3] : memref<1x8x2x8x8xf32, #tpu.memory_space<vmem>>, vector<1x8x1x8x8xf32>
    %1 = vector.shape_cast %0 : vector<1x8x1x8x8xf32> to vector<8x8x8xf32>
    %c0_4 = arith.constant 0 : index
    %c0_5 = arith.constant 0 : index
    %c1 = arith.constant 1 : index
    %c0_6 = arith.constant 0 : index
    %c0_7 = arith.constant 0 : index
    %2 = vector.load %arg2[%c0_4, %c0_5, %c1, %c0_6, %c0_7] : memref<1x8x2x8x8xf32, #tpu.memory_space<vmem>>, vector<1x8x1x8x8xf32>
    %3 = vector.shape_cast %2 : vector<1x8x1x8x8xf32> to vector<8x8x8xf32>
    %4 = arith.addf %1, %3 : vector<8x8x8xf32>
    %5 = vector.extract_strided_slice %4 {offsets = [0, 0, 0], sizes = [8, 8, 4], strides = [1, 1, 1]} : vector<8x8x8xf32> to vector<8x8x4xf32>
    %6 = vector.extract_strided_slice %4 {offsets = [0, 0, 4], sizes = [8, 8, 4], strides = [1, 1, 1]} : vector<8x8x8xf32> to vector<8x8x4xf32>
    %7 = arith.addf %5, %6 : vector<8x8x4xf32>
    %8 = vector.shape_cast %7 : vector<8x8x4xf32> to vector<64x4xf32>
    %c0_8 = arith.constant 0 : index
    %c0_9 = arith.constant 0 : index
    %9 = vector.load %arg3[%c0_8, %c0_9] : memref<4x4xf32, #tpu.memory_space<vmem>>, vector<4x4xf32>
    %cst = arith.constant dense<0.000000e+00> : vector<64x4xf32>
    %10 = tpu.matmul %8, %9, %cst {dimension_numbers = #tpu.dot_dimension_numbers<[1], [0], [0], [1], [0, 0, 1, 1], [], []>} : vector<64x4xf32>, vector<4x4xf32>, vector<64x4xf32> -> vector<64x4xf32>
    %c0_10 = arith.constant 0 : index
    %c0_11 = arith.constant 0 : index
    %11 = vector.load %arg4[%c0_10, %c0_11] : memref<1x4xf32, #tpu.memory_space<vmem>>, vector<1x4xf32>
    %12 = vector.shape_cast %11 : vector<1x4xf32> to vector<4xf32>
    %13 = vector.shape_cast %12 : vector<4xf32> to vector<1x4xf32>
    %14 = vector.broadcast %13 : vector<1x4xf32> to vector<64x4xf32>
    %15 = arith.addf %10, %14 : vector<64x4xf32>
    %16 = vector.shape_cast %15 : vector<64x4xf32> to vector<8x8x4xf32>
    %c0_12 = arith.constant 0 : index
    %c0_13 = arith.constant 0 : index
    %c0_14 = arith.constant 0 : index
    %c0_15 = arith.constant 0 : index
    %17 = vector.load %arg5[%c0_12, %c0_13, %c0_14, %c0_15] : memref<1x8x8x4xf32, #tpu.memory_space<vmem>>, vector<1x8x8x4xf32>
    %18 = vector.shape_cast %17 : vector<1x8x8x4xf32> to vector<8x8x4xf32>
    %19 = vector.shape_cast %16 : vector<8x8x4xf32> to vector<1x8x8x4xf32>
    tpu.vector_store %arg5[%c0_12, %c0_13, %c0_14, %c0_15], %19 {strides = array<i32>} : memref<1x8x8x4xf32, #tpu.memory_space<vmem>>, vector<1x8x8x4xf32>,
    return
  }
  func.func @transform_0(%arg0: i32, %arg1: i32) -> (i32, i32, i32, i32, i32) {
    %c0_i32 = arith.constant 0 : i32
    %c0_i32_0 = arith.constant 0 : i32
    %c0_i32_1 = arith.constant 0 : i32
    %c0_i32_2 = arith.constant 0 : i32
    return %arg0, %arg1, %c0_i32, %c0_i32_0, %c0_i32_1 : i32, i32, i32, i32, i32
  }
  func.func @transform_1(%arg0: i32, %arg1: i32) -> (i32, i32) {
    %c0_i32 = arith.constant 0 : i32
    %c0_i32_0 = arith.constant 0 : i32
    %c0_i32_1 = arith.constant 0 : i32
    return %c0_i32, %c0_i32_0 : i32, i32
  }
  func.func @transform_2(%arg0: i32, %arg1: i32) -> (i32, i32) {
    %c0_i32 = arith.constant 0 : i32
    %c0_i32_0 = arith.constant 0 : i32
    %c0_i32_1 = arith.constant 0 : i32
    return %c0_i32, %c0_i32_0 : i32, i32
  }
  func.func @transform_3(%arg0: i32, %arg1: i32) -> (i32, i32, i32, i32) {
    %c0_i32 = arith.constant 0 : i32
    %c0_i32_0 = arith.constant 0 : i32
    %c0_i32_1 = arith.constant 0 : i32
    return %arg0, %arg1, %c0_i32, %c0_i32_0 : i32, i32, i32, i32
  }
}

</mosaic_0001>

<llo_original>
// kernel: transition_down.1
$region0: #{transition_down.1}
  #allocation0 [shape = 'u32[]', space=smem, size = 0x4, offset = 0x4, fixed_abs, tag = 'smem constant byte address 0x4 - core index']
  #allocation1 [shape = 'u32[144,128]{1,0:T(1,128)}', space=vmem, size = 0x12000, scoped, tag = 'internal scratch']
  %s0 = inlined_call_operand.vmem [shape: f32[2,8,2,8,8], index: 0, kind: input, shape index: {}]
  %s1 = inlined_call_operand.vmem [shape: f32[4,4], index: 1, kind: input, shape index: {}]
  %s2 = inlined_call_operand.vmem [shape: f32[1,4], index: 2, kind: input, shape index: {}]
  %s3 = inlined_call_operand.vmem [shape: f32[2,8,8,4], index: 3, kind: output, shape index: {}]
  %s4 = sld [smem:[#allocation0]]
  $region45: #{transition_down.1} parent=0
    _
  %s6 = ssub.s32 1, %s4
  %s7 = scalar_select 0, %s6, %s4
  loop: start=0, step=1, limit=4
  $region2: #{transition_down.1} parent=0 // loop_pre_header
    _
  $region3: #{transition_down.1} parent=0 // loop_header
    %s9 = sphi 0, %s13
    %p10 = scmp.ge.s32.totalorder %s9, 4
    %s16 = sphi 0, %s28
    %s17 = sphi 0, %s24
    %s18 = sphi 0, %s16
    %s19 = sphi 0, %s17
    %s20 = sphi 0, %s18
    %s21 = sphi 0, %s19
    %s33 = sphi 0, %s35
    %s36 = sphi 0, %s33
    %s37 = sphi 0, %s36
    %s53 = sphi 0, %s37
    %s57 = sphi 0, %s57
    %s59 = sphi 0, %s57
    %s60 = sphi 0, %s59
    %s74 = sphi 0, %s60
    %s78 = sphi 0, %s78
    %s80 = sphi 0, %s78
    %s81 = sphi 0, %s80
    %s95 = sphi 0, %s81
    %s103 = sphi 0, %s105
    %s106 = sphi 0, %s103
    %s107 = sphi 0, %s106
    %s123 = sphi 0, %s107
  $region4: #{transition_down.1} parent=0 // loop_header_branch
    %12 = sbr.rel (%p10) target = $region8
  $region5: #{transition_down.1} parent=0 // loop_body
    %s14 = ssub.s32 %s9, 1
    %s15 = ssub.s32 %s9, 2
    %s22 = sadd.s32 1, %s17
    %p23 = scmp.ge.s32.totalorder %s22, 1
    %s24 = scalar_select %p23, 0, %s22
    %s25 = sadd.s32 1, %s16
    %s26 = scalar_select %p23, %s25, %s16
    %p27 = scmp.ge.s32.totalorder %s26, 2
    %s28 = scalar_select %p27, 0, %s26
    %s29 = ssub.s32 %s16, %s28
    %s30 = ssub.s32 %s17, %s24
    %s31 = sor.u32 %s29, %s30
    %p32 = scmp.eq.s32.totalorder %s31, 0
    %s34 = sadd.s32 %s33, 1
    %s35 = scalar_select %p32, %s33, %s34
    %p38 = pneg %p32
    %p39 = scmp.eq.s32.totalorder %s9, 1
    %p40 = por %p38, %p39
    %p41 = scmp.ne.s32.totalorder %s33, %s36
    %p42 = scmp.eq.s32.totalorder %s9, 0
    %p43 = por %p41, %p42
    %p44 = scmp.ne.s32.totalorder %s33, %s36
    %p45 = scmp.eq.s32.totalorder %s14, 1
    %p46 = por %p44, %p45
    %p47 = scmp.ne.s32.totalorder %s36, %s37
    %p48 = scmp.eq.s32.totalorder %s14, 0
    %p49 = por %p47, %p48
    %p50 = scmp.ne.s32.totalorder %s36, %s37
    %p51 = scmp.eq.s32.totalorder %s15, 1
    %p52 = por %p50, %p51
    %p54 = scmp.ne.s32.totalorder %s37, %s53
    %p55 = scmp.eq.s32.totalorder %s15, 0
    %p56 = por %p54, %p55
    %s58 = sadd.s32 %s57, 1
    %p61 = scmp.eq.s32.totalorder %s9, 1
    %p62 = scmp.ne.s32.totalorder %s57, %s59
    %p63 = scmp.eq.s32.totalorder %s9, 0
    %p64 = por %p62, %p63
    %p65 = scmp.ne.s32.totalorder %s57, %s59
    %p66 = scmp.eq.s32.totalorder %s14, 1
    %p67 = por %p65, %p66
    %p68 = scmp.ne.s32.totalorder %s59, %s60
    %p69 = scmp.eq.s32.totalorder %s14, 0
    %p70 = por %p68, %p69
    %p71 = scmp.ne.s32.totalorder %s59, %s60
    %p72 = scmp.eq.s32.totalorder %s15, 1
    %p73 = por %p71, %p72
    %p75 = scmp.ne.s32.totalorder %s60, %s74
    %p76 = scmp.eq.s32.totalorder %s15, 0
    %p77 = por %p75, %p76
    %s79 = sadd.s32 %s78, 1
    %p82 = scmp.eq.s32.totalorder %s9, 1
    %p83 = scmp.ne.s32.totalorder %s78, %s80
    %p84 = scmp.eq.s32.totalorder %s9, 0
    %p85 = por %p83, %p84
    %p86 = scmp.ne.s32.totalorder %s78, %s80
    %p87 = scmp.eq.s32.totalorder %s14, 1
    %p88 = por %p86, %p87
    %p89 = scmp.ne.s32.totalorder %s80, %s81
    %p90 = scmp.eq.s32.totalorder %s14, 0
    %p91 = por %p89, %p90
    %p92 = scmp.ne.s32.totalorder %s80, %s81
    %p93 = scmp.eq.s32.totalorder %s15, 1
    %p94 = por %p92, %p93
    %p96 = scmp.ne.s32.totalorder %s81, %s95
    %p97 = scmp.eq.s32.totalorder %s15, 0
    %p98 = por %p96, %p97
    %s99 = ssub.s32 %s16, %s28
    %s100 = ssub.s32 %s17, %s24
    %s101 = sor.u32 %s99, %s100
    %p102 = scmp.eq.s32.totalorder %s101, 0
    %s104 = sadd.s32 %s103, 1
    %s105 = scalar_select %p102, %s103, %s104
    %p108 = pneg %p102
    %p109 = scmp.eq.s32.totalorder %s9, 1
    %p110 = por %p108, %p109
    %p111 = scmp.ne.s32.totalorder %s103, %s106
    %p112 = scmp.eq.s32.totalorder %s9, 0
    %p113 = por %p111, %p112
    %p114 = scmp.ne.s32.totalorder %s103, %s106
    %p115 = scmp.eq.s32.totalorder %s14, 1
    %p116 = por %p114, %p115
    %p117 = scmp.ne.s32.totalorder %s106, %s107
    %p118 = scmp.eq.s32.totalorder %s14, 0
    %p119 = por %p117, %p118
    %p120 = scmp.ne.s32.totalorder %s106, %s107
    %p121 = scmp.eq.s32.totalorder %s15, 1
    %p122 = por %p120, %p121
    %p124 = scmp.ne.s32.totalorder %s107, %s123
    %p125 = scmp.eq.s32.totalorder %s15, 0
    %p126 = por %p124, %p125
    %p127 = scmp.le.s32.totalorder 1, %s9
    %p128 = scmp.lt.s32.totalorder %s9, 3
    %p129 = pnand %p127, %p128
    %p130 = pneg %p129
    // Predicated region
    $region9: #{transition_down.1} parent=5 // pred_check
      _
    $region10: #{transition_down.1} parent=5 // pred_check_branch
      %132 = sbr.rel (%p129) target = $region12
    $region11: #{transition_down.1} parent=5 // pred_region
      %s133 = ssub.s32 %s9, 1
      // Predicated region
      $region13: #{transition_down.1} parent=11 // pred_check
        %p134 = pneg %p70
      $region14: #{transition_down.1} parent=11 // pred_check_branch
        %136 = sbr.rel (%p134) target = $region16
      $region15: #{transition_down.1} parent=11 // pred_region
        _
      $region16: #{transition_down.1} parent=11 // pred_fallthru
        _
      // Predicated region
      $region17: #{transition_down.1} parent=11 // pred_check
        %p137 = pneg %p91
      $region18: #{transition_down.1} parent=11 // pred_check_branch
        %139 = sbr.rel (%p137) target = $region20
      $region19: #{transition_down.1} parent=11 // pred_region
        _
      $region20: #{transition_down.1} parent=11 // pred_fallthru
        _
    $region12: #{transition_down.1} parent=5 // pred_fallthru
      _
    %p140 = scmp.lt.s32.totalorder %s9, 2
    // Predicated region
    $region21: #{transition_down.1} parent=5 // pred_check
      %p141 = pneg %p140
    $region22: #{transition_down.1} parent=5 // pred_check_branch
      %143 = sbr.rel (%p141) target = $region24
    $region23: #{transition_down.1} parent=5 // pred_region
      // Predicated region
      $region25: #{transition_down.1} parent=23 // pred_check
        %p144 = pneg %p43
      $region26: #{transition_down.1} parent=23 // pred_check_branch
        %146 = sbr.rel (%p144) target = $region28
      $region27: #{transition_down.1} parent=23 // pred_region
        %s147 = smul.u32 8, %s17
        %p148 = scmp.lt.s32.totalorder %s16, 1
        %s149 = scalar_select %p148, %s16, 1
        %p150 = scmp.lt.s32.totalorder %s147, 7
        %s151 = scalar_select %p150, %s147, 7
        %s152 = smul.addr %s151, 2
        %s153 = smul.addr %s149, 16
        %s154 = sadd.s32 %s152, %s153
        %s155 = smul.addr %s154, 8
        %s156 = scalar_lea.vmem %s0, %s155
        %s157 = smul.u32 8, %s17
      $region28: #{transition_down.1} parent=23 // pred_fallthru
        _
    $region24: #{transition_down.1} parent=5 // pred_fallthru
      _
    %p158 = scmp.le.s32.totalorder 1, %s9
    %p159 = scmp.lt.s32.totalorder %s9, 3
    %p160 = pnand %p158, %p159
    %p161 = pneg %p160
    // Predicated region
    $region29: #{transition_down.1} parent=5 // pred_check
      _
    $region30: #{transition_down.1} parent=5 // pred_check_branch
      %163 = sbr.rel (%p160) target = $region32
    $region31: #{transition_down.1} parent=5 // pred_region
      %s164 = ssub.s32 %s9, 1
      %s165 = smul.u32 8, %s19
      %p166 = scmp.lt.s32.totalorder %s18, 1
      %s167 = scalar_select %p166, %s18, 1
      %p168 = scmp.lt.s32.totalorder %s165, 7
      %s169 = scalar_select %p168, %s165, 7
      %s170 = smul.addr %s169, 2
      %s171 = smul.addr %s167, 16
      %s172 = sadd.s32 %s170, %s171
      %s173 = smul.addr %s172, 8
      %s174 = scalar_lea.vmem %s0, %s173
      %p175 = pneg %p49
      %p176 = pneg %p46
      %p177 = pneg %p70
      %p178 = pneg %p67
      %p179 = pneg %p91
      %p180 = pneg %p88
      %p181 = pneg %p119
      %p182 = pneg %p116
      %s183 = smul.u32 8, %s19
      %p184 = scmp.lt.s32.totalorder %s18, 1
      %s185 = scalar_select %p184, %s18, 1
      %p186 = scmp.lt.s32.totalorder %s183, 7
      %s187 = scalar_select %p186, %s183, 7
      %s188 = smul.addr %s185, 8
      %s189 = sadd.s32 %s187, %s188
      %s190 = smul.addr %s189, 8
      %s191 = scalar_lea.vmem %s3, %s190
      %s192 = smul.u32 8, %s19
      %p193 = scmp.lt.s32.totalorder %s18, 1
      %s194 = scalar_select %p193, %s18, 1
      %p195 = scmp.lt.s32.totalorder %s192, 7
      %s196 = scalar_select %p195, %s192, 7
      %s197 = smul.addr %s196, 2
      %s198 = smul.addr %s194, 16
      %s199 = sadd.s32 %s197, %s198
      %s200 = smul.addr %s199, 8
      %s201 = scalar_lea.vmem %s0, %s200
      %s202 = smul.u32 8, %s19
      %s203 = smul.u32 8, %s19
      %p204 = scmp.lt.s32.totalorder %s18, 1
      %s205 = scalar_select %p204, %s18, 1
      %p206 = scmp.lt.s32.totalorder %s203, 7
      %s207 = scalar_select %p206, %s203, 7
      %s208 = smul.addr %s205, 8
      %s209 = sadd.s32 %s207, %s208
      %s210 = smul.addr %s209, 8
      %s211 = scalar_lea.vmem %s3, %s210
      %s212 = smul.u32 8, %s19
      %v213 = vld [vmem:[%s201] sm:$0xff]
      %v214 = vld [vmem:[%s201 + $0x10] sm:$0xff]
      %v215 = vld [vmem:[%s201 + $0x20] sm:$0xff]
      %v216 = vld [vmem:[%s201 + $0x30] sm:$0xff]
      %v217 = vld [vmem:[%s201 + $0x40] sm:$0xff]
      %v218 = vld [vmem:[%s201 + $0x50] sm:$0xff]
      %v219 = vld [vmem:[%s201 + $0x60] sm:$0xff]
      %v220 = vld [vmem:[%s201 + $0x70] sm:$0xff]
      %s221 = scalar_lea.vmem %s201, 8
      %v222 = vld [vmem:[%s221] sm:$0xff]
      %v223 = vld [vmem:[%s221 + $0x10] sm:$0xff]
      %v224 = vld [vmem:[%s221 + $0x20] sm:$0xff]
      %v225 = vld [vmem:[%s221 + $0x30] sm:$0xff]
      %v226 = vld [vmem:[%s221 + $0x40] sm:$0xff]
      %v227 = vld [vmem:[%s221 + $0x50] sm:$0xff]
      %v228 = vld [vmem:[%s221 + $0x60] sm:$0xff]
      %v229 = vld [vmem:[%s221 + $0x70] sm:$0xff]
      %v230 = vadd.f32 %v213, %v222
      %v231 = vadd.f32 %v214, %v223
      %v232 = vadd.f32 %v215, %v224
      %v233 = vadd.f32 %v216, %v225
      %v234 = vadd.f32 %v217, %v226
      %v235 = vadd.f32 %v218, %v227
      %v236 = vadd.f32 %v219, %v228
      %v237 = vadd.f32 %v220, %v229
      %246 = vrot.lane.b32.xlu0 %v230, 124
      %v247 = vpop.permute.xlu0 %246
      %248 = vrot.lane.b32.xlu0 %v231, 124
      %v249 = vpop.permute.xlu0 %248
      %250 = vrot.lane.b32.xlu0 %v232, 124
      %v251 = vpop.permute.xlu0 %250
      %252 = vrot.lane.b32.xlu0 %v233, 124
      %v253 = vpop.permute.xlu0 %252
      %254 = vrot.lane.b32.xlu0 %v234, 124
      %v255 = vpop.permute.xlu0 %254
      %256 = vrot.lane.b32.xlu0 %v235, 124
      %v257 = vpop.permute.xlu0 %256
      %258 = vrot.lane.b32.xlu0 %v236, 124
      %v259 = vpop.permute.xlu0 %258
      %260 = vrot.lane.b32.xlu0 %v237, 124
      %v261 = vpop.permute.xlu0 %260
      %v270 = vadd.f32 %v230, %v247
      %v271 = vadd.f32 %v231, %v249
      %v272 = vadd.f32 %v232, %v251
      %v273 = vadd.f32 %v233, %v253
      %v274 = vadd.f32 %v234, %v255
      %v275 = vadd.f32 %v235, %v257
      %v276 = vadd.f32 %v236, %v259
      %v277 = vadd.f32 %v237, %v261
      %v278 = vld [vmem:[%s1] sm:$0xf]
      %v279 = vld [vmem:[%s2] sm:$0x1]
      %v281 = vlaneseq
      %v282 = vshrl.u32 %v281, 7
      %v283 = vsub.s32 0, %v282
      %v284 = vrot.slane %v279, %v283
      %vm286 = vcmask 31744
      %v288 = vsel %vm286, %v270, 0
      %v291 = vsel %vm286, %v271, 0
      %v294 = vsel %vm286, %v272, 0
      %v297 = vsel %vm286, %v273, 0
      %v300 = vsel %vm286, %v274, 0
      %v303 = vsel %vm286, %v275, 0
      %v306 = vsel %vm286, %v276, 0
      %v309 = vsel %vm286, %v277, 0
      %vm311 = vcmask 1043456
      %v313 = vsel %vm311, %v278, 0
      %315 = vmatprep.subr.mxu0 0.0
      %316 = vmatpush1.msra.mxu0 %v313
      %317 = vmatprep.subr.mxu0 0.0
      %318 = vmatpush1.msra.mxu0 0.0
      %319 = vmatprep.subr.mxu0 0.0
      %320 = vmatpush1.msra.mxu0 0.0
      %321 = vmatprep.subr.mxu0 0.0
      %322 = vmatpush1.msra.mxu0 0.0
      %323 = vmatprep.subr.mxu0 0.0
      %324 = vmatpush1.msra.mxu0 0.0
      %325 = vmatprep.subr.mxu0 0.0
      %326 = vmatpush1.msra.mxu0 0.0
      %327 = vmatprep.subr.mxu0 0.0
      %328 = vmatpush1.msra.mxu0 0.0
      %329 = vmatprep.subr.mxu0 0.0
      %330 = vmatpush1.msra.mxu0 0.0
      %331 = vmatprep.subr.mxu0 0.0
      %332 = vmatpush1.msra.mxu0 0.0
      %333 = vmatprep.subr.mxu0 0.0
      %334 = vmatpush1.msra.mxu0 0.0
      %335 = vmatprep.subr.mxu0 0.0
      %336 = vmatpush1.msra.mxu0 0.0
      %337 = vmatprep.subr.mxu0 0.0
      %338 = vmatpush1.msra.mxu0 0.0
      %339 = vmatprep.subr.mxu0 0.0
      %340 = vmatpush1.msra.mxu0 0.0
      %341 = vmatprep.subr.mxu0 0.0
      %342 = vmatpush1.msra.mxu0 0.0
      %343 = vmatprep.subr.mxu0 0.0
      %344 = vmatpush1.msra.mxu0 0.0
      %345 = vmatprep.subr.mxu0 0.0
      %346 = vmatpush1.msra.mxu0 0.0
      %347 = vmatprep.subr.mxu0 0.0
      %348 = vmatpush1.msra.mxu0 0.0
      %349 = vmatprep.subr.mxu0 0.0
      %350 = vmatpush1.msra.mxu0 0.0
      %351 = vmatprep.subr.mxu0 0.0
      %352 = vmatpush1.msra.mxu0 0.0
      %353 = vmatprep.subr.mxu0 0.0
      %354 = vmatpush1.msra.mxu0 0.0
      %355 = vmatprep.subr.mxu0 0.0
      %356 = vmatpush1.msra.mxu0 0.0
      %357 = vmatprep.subr.mxu0 0.0
      %358 = vmatpush1.msra.mxu0 0.0
      %359 = vmatprep.subr.mxu0 0.0
      %360 = vmatpush1.msra.mxu0 0.0
      %361 = vmatprep.subr.mxu0 0.0
      %362 = vmatpush1.msra.mxu0 0.0
      %363 = vmatprep.subr.mxu0 0.0
      %364 = vmatpush1.msra.mxu0 0.0
      %365 = vmatprep.subr.mxu0 0.0
      %366 = vmatpush1.msra.mxu0 0.0
      %367 = vmatprep.subr.mxu0 0.0
      %368 = vmatpush1.msra.mxu0 0.0
      %369 = vmatprep.subr.mxu0 0.0
      %370 = vmatpush1.msra.mxu0 0.0
      %371 = vmatprep.subr.mxu0 0.0
      %372 = vmatpush1.msra.mxu0 0.0
      %373 = vmatprep.subr.mxu0 0.0
      %374 = vmatpush1.msra.mxu0 0.0
      %375 = vmatprep.subr.mxu0 0.0
      %376 = vmatpush1.msra.mxu0 0.0
      %377 = vmatprep.subr.mxu0 0.0
      %378 = vmatpush1.msra.mxu0 0.0
      %379 = vmatprep.mubr.f32.mxu0 0.0
      %380 = vmatmul.mubr.f32.gmra.mrb[0].mxu0 %v288
      %v381 = vpop.f32.mrb[0].mxu0
      %v382 = vadd.f32 %v284, %v381
      %v383 = vpop.f32.mrb[0].mxu0
      %384 = vmatprep.mubr.f32.mxu0 0.0
      %385 = vmatmul.mubr.f32.gmra.mrb[0].mxu0 %v291
      %v386 = vpop.f32.mrb[0].mxu0
      %v387 = vadd.f32 %v284, %v386
      %v388 = vpop.f32.mrb[0].mxu0
      %389 = vmatprep.mubr.f32.mxu0 0.0
      %390 = vmatmul.mubr.f32.gmra.mrb[0].mxu0 %v294
      %v391 = vpop.f32.mrb[0].mxu0
      %v392 = vadd.f32 %v284, %v391
      %v393 = vpop.f32.mrb[0].mxu0
      %394 = vmatprep.mubr.f32.mxu0 0.0
      %395 = vmatmul.mubr.f32.gmra.mrb[0].mxu0 %v297
      %v396 = vpop.f32.mrb[0].mxu0
      %v397 = vadd.f32 %v284, %v396
      %v398 = vpop.f32.mrb[0].mxu0
      %399 = vmatprep.mubr.f32.mxu0 0.0
      %400 = vmatmul.mubr.f32.gmra.mrb[0].mxu0 %v300
      %v401 = vpop.f32.mrb[0].mxu0
      %v402 = vadd.f32 %v284, %v401
      %v403 = vpop.f32.mrb[0].mxu0
      %404 = vmatprep.mubr.f32.mxu0 0.0
      %405 = vmatmul.mubr.f32.gmra.mrb[0].mxu0 %v303
      %v406 = vpop.f32.mrb[0].mxu0
      %v407 = vadd.f32 %v284, %v406
      %v408 = vpop.f32.mrb[0].mxu0
      %409 = vmatprep.mubr.f32.mxu0 0.0
      %410 = vmatmul.mubr.f32.gmra.mrb[0].mxu0 %v306
      %v411 = vpop.f32.mrb[0].mxu0
      %v412 = vadd.f32 %v284, %v411
      %v413 = vpop.f32.mrb[0].mxu0
      %414 = vmatprep.mubr.f32.mxu0 0.0
      %415 = vmatmul.mubr.f32.gmra.mrb[0].mxu0 %v309
      %v416 = vpop.f32.mrb[0].mxu0
      %v417 = vadd.f32 %v284, %v416
      %v418 = vpop.f32.mrb[0].mxu0
      %419 = vdwg.mxu0
      %420 = vst.msk [vmem:[%s211] sm:$0xff] %vm286, %v382
      %421 = vst.msk [vmem:[%s211 + $0x8] sm:$0xff] %vm286, %v387
      %422 = vst.msk [vmem:[%s211 + $0x10] sm:$0xff] %vm286, %v392
      %423 = vst.msk [vmem:[%s211 + $0x18] sm:$0xff] %vm286, %v397
      %424 = vst.msk [vmem:[%s211 + $0x20] sm:$0xff] %vm286, %v402
      %425 = vst.msk [vmem:[%s211 + $0x28] sm:$0xff] %vm286, %v407
      %426 = vst.msk [vmem:[%s211 + $0x30] sm:$0xff] %vm286, %v412
      %427 = vst.msk [vmem:[%s211 + $0x38] sm:$0xff] %vm286, %v417
      %s428 = smul.u32 8, %s19
      %p429 = scmp.lt.s32.totalorder %s18, 1
      %s430 = scalar_select %p429, %s18, 1
      %p431 = scmp.lt.s32.totalorder %s428, 7
      %s432 = scalar_select %p431, %s428, 7
      %s433 = smul.addr %s430, 8
      %s434 = sadd.s32 %s432, %s433
      %s435 = smul.addr %s434, 8
      %s436 = scalar_lea.vmem %s3, %s435
      // Predicated region
      $region33: #{transition_down.1} parent=31 // pred_check
        %p437 = pneg %p116
      $region34: #{transition_down.1} parent=31 // pred_check_branch
        %439 = sbr.rel (%p437) target = $region36
      $region35: #{transition_down.1} parent=31 // pred_region
        %s440 = smul.u32 8, %s19
      $region36: #{transition_down.1} parent=31 // pred_fallthru
        _
    $region32: #{transition_down.1} parent=5 // pred_fallthru
      _
    %p441 = scmp.le.s32.totalorder 2, %s9
    // Predicated region
    $region37: #{transition_down.1} parent=5 // pred_check
      %p442 = pneg %p441
    $region38: #{transition_down.1} parent=5 // pred_check_branch
      %444 = sbr.rel (%p442) target = $region40
    $region39: #{transition_down.1} parent=5 // pred_region
      %s445 = ssub.s32 %s9, 2
      // Predicated region
      $region41: #{transition_down.1} parent=39 // pred_check
        %p446 = pneg %p122
      $region42: #{transition_down.1} parent=39 // pred_check_branch
        %448 = sbr.rel (%p446) target = $region44
      $region43: #{transition_down.1} parent=39 // pred_region
        %s449 = smul.u32 8, %s21
        %p450 = scmp.lt.s32.totalorder %s20, 1
        %s451 = scalar_select %p450, %s20, 1
        %p452 = scmp.lt.s32.totalorder %s449, 7
        %s453 = scalar_select %p452, %s449, 7
        %s454 = smul.addr %s451, 8
        %s455 = sadd.s32 %s453, %s454
        %s456 = smul.addr %s455, 8
        %s457 = scalar_lea.vmem %s3, %s456
      $region44: #{transition_down.1} parent=39 // pred_fallthru
        _
    $region40: #{transition_down.1} parent=5 // pred_fallthru
      _
  $region6: #{transition_down.1} parent=0 // loop_footer
    %s13 = sadd.s32 1, %s9
  $region7: #{transition_down.1} parent=0 // loop_footer_branch
    %8 = sbr.rel target = $region3
  $region8: #{transition_down.1} parent=0 // loop_exit
    _

</llo_original>
